<compile_context>
chip_gen: v7x
topology: tpu7x:2x2x1
jax: 0.10.0
libtpu: 0.0.40
codegen_flags: <defaults>
</compile_context>

<pallas_src>
import jax
import jax.numpy as jnp
from jax.experimental import pallas as pl
from jax.experimental.pallas import tpu as pltpu


_LANE = 1024                             # lane-dense slab width (multiple of 128)
_TARGET_BLOCK_BYTES = 4 * 1024 * 1024    # ~4 MiB per block (85%+ of copy roofline)
_VMEM_LIMIT_BYTES = 24 * 1024 * 1024     # 4 bufs * 4 MiB (in+out double-buffered) + headroom


def _copy_kernel(x_ref, o_ref):
    # Abstract-base forward contract: output tensor == input tensor.
    o_ref[...] = x_ref[...]


def _sublane_multiple(dtype) -> int:
    """Native sublane tile multiple: 8 for 4-byte, 16 for 2-byte, 32 for 1-byte."""
    itemsize = jnp.dtype(dtype).itemsize
    return max(8, 32 // max(itemsize, 1))


def _round_up(x: int, m: int) -> int:
    return -(-x // m) * m


def _choose_2d_view(shape, total):
    """Pick a (rows, lanes) 2-D view of the flat data requiring NO element padding."""
    if total % _LANE == 0:
        return total // _LANE, _LANE          # lane-dense: unmasked full-vreg stores
    if len(shape) >= 2 and shape[-1] > 0:
        return total // shape[-1], shape[-1]  # free leading-dim collapse
    return 1, total                           # 0-D / 1-D fallback


def _choose_blocks(rows, lanes, dtype):
    """Byte-budgeted block shape; each block dim is sublane/lane aligned or full."""
    itemsize = jnp.dtype(dtype).itemsize
    sub = _sublane_multiple(dtype)
    target_elems = max(1, _TARGET_BLOCK_BYTES // itemsize)

    # Lane blocking: keep the full lane extent unless even `sub` rows of it blow
    # the byte budget; then tile lanes in 128-multiples (ragged tail is masked).
    if lanes * sub <= target_elems:
        block_lanes = lanes
    else:
        block_lanes = min(_round_up(lanes, 128),
                          max(128, (target_elems // sub) // 128 * 128))

    # Row blocking: fill the byte budget, rounded down to the sublane multiple.
    block_rows = max(sub, (target_elems // block_lanes) // sub * sub)
    if block_rows >= rows:
        block_rows = rows  # single full-extent block (always legal)
        # v7x megacore: give mid-size tensors >= 2 grid steps so the "parallel"
        # grid axis actually engages both TensorCores.
        if block_lanes >= lanes and rows >= 2 * sub:
            block_rows = _round_up(-(-rows // 2), sub)
    return block_rows, block_lanes


def base_model_forward(x: jnp.ndarray) -> jnp.ndarray:
    """Pallas pass-through forward for the abstract BaseModel.

    Preserves shape, dtype and values of the input tensor (NCHW or any rank),
    with zero wrapper-side padding/slicing traffic.
    """
    orig_shape = x.shape
    total = int(x.size)
    if total == 0:
        # Zero-size grid would not lower; nothing to copy.
        return x

    rows, lanes = _choose_2d_view(orig_shape, total)
    block_rows, block_lanes = _choose_blocks(rows, lanes, x.dtype)
    grid = (pl.cdiv(rows, block_rows), pl.cdiv(lanes, block_lanes))
    nbytes = total * jnp.dtype(x.dtype).itemsize

    x2d = x.reshape(rows, lanes)  # contiguous reshape: no extra HBM stream

    out2d = pl.pallas_call(
        _copy_kernel,
        out_shape=jax.ShapeDtypeStruct((rows, lanes), x.dtype),
        grid=grid,
        in_specs=[pl.BlockSpec((block_rows, block_lanes), lambda i, j: (i, j))],
        out_specs=pl.BlockSpec((block_rows, block_lanes), lambda i, j: (i, j)),
        compiler_params=pltpu.CompilerParams(
            # Independent copy blocks: both axes shardable across TCs (v7x);
            # neutral on single-TC v5e/v6e.
            dimension_semantics=("parallel", "parallel"),
            # Explicit scoped-VMEM budget: covers 4 x 4 MiB double-buffered
            # blocks on every generation (v5e 16 MiB default, v7x 32 MiB).
            vmem_limit_bytes=_VMEM_LIMIT_BYTES,
        ),
        # Mem-bound copy: tell XLA the real byte traffic.
        cost_estimate=pl.CostEstimate(
            flops=0, transcendentals=0, bytes_accessed=2 * nbytes),
    )(x2d)

    return out2d.reshape(orig_shape)


def get_parameters_summary():
    """Mirror of BaseModel.get_parameters(): the base class has no params."""
    total_params = 0
    trainable_params = 0
    return {
        "total_parameters": total_params,
        "trainable_parameters": trainable_params,
        "model_size_mb": total_params * 4 / (1024 * 1024),
    }


if __name__ == "__main__":
    key = jax.random.PRNGKey(0)
    # Small, forward-consistent NCHW input: batch=2, channels=4, 16x16 spatial.
    x = jax.random.normal(key, (2, 4, 16, 16), dtype=jnp.float32)

    fwd = jax.jit(base_model_forward)
    y = jax.block_until_ready(fwd(x))

    # Semantics check: abstract-base forward contract is identity pass-through.
    assert y.shape == x.shape and y.dtype == x.dtype
    assert bool(jnp.array_equal(y, x))

    _ = get_parameters_summary()  # zero-parameter summary, parity with PyTorch helper

    print("KERNEL_OK")
</pallas_src>

<mosaic_0001>
module attributes {stable_mosaic.version = 11 : i64} {
  func.func @_copy_kernel(%arg0: i32, %arg1: i32, %arg2: memref<2x1024xf32, #tpu.memory_space<vmem>>, %arg3: memref<2x1024xf32, #tpu.memory_space<vmem>>) attributes {dimension_semantics = [#tpu.dimension_semantics<parallel>, #tpu.dimension_semantics<parallel>], iteration_bounds = array<i64: 1, 1>, scalar_prefetch = 0 : i64, scratch_operands = 0 : i64, tpu.core_type = #tpu.core_type<tc>, window_params = [{transform_indices = @transform_0, window_bounds = array<i64: 2, 1024>}, {transform_indices = @transform_1, window_bounds = array<i64: 2, 1024>}]} {
    %c0 = arith.constant 0 : index
    %c0_0 = arith.constant 0 : index
    %0 = vector.load %arg2[%c0, %c0_0] : memref<2x1024xf32, #tpu.memory_space<vmem>>, vector<2x1024xf32>
    %c0_1 = arith.constant 0 : index
    %c0_2 = arith.constant 0 : index
    %1 = vector.load %arg3[%c0_1, %c0_2] : memref<2x1024xf32, #tpu.memory_space<vmem>>, vector<2x1024xf32>
    tpu.vector_store %arg3[%c0_1, %c0_2], %0 {strides = array<i32>} : memref<2x1024xf32, #tpu.memory_space<vmem>>, vector<2x1024xf32>,
    return
  }
  func.func @transform_0(%arg0: i32, %arg1: i32) -> (i32, i32) {
    %c0_i32 = arith.constant 0 : i32
    return %arg0, %arg1 : i32, i32
  }
  func.func @transform_1(%arg0: i32, %arg1: i32) -> (i32, i32) {
    %c0_i32 = arith.constant 0 : i32
    return %arg0, %arg1 : i32, i32
  }
}

</mosaic_0001>

<llo_original>
// kernel: base_model_forward.1
$region0: #{base_model_forward.1}
  #allocation0 [shape = 'u32[]', space=smem, size = 0x4, offset = 0x4, fixed_abs, tag = 'smem constant byte address 0x4 - core index']
  #allocation1 [shape = 'u32[144,128]{1,0:T(1,128)}', space=vmem, size = 0x12000, scoped, tag = 'internal scratch']
  %s0 = inlined_call_operand.vmem [shape: f32[2,1024], index: 0, kind: input, shape index: {}]
  %s1 = inlined_call_operand.vmem [shape: f32[2,1024], index: 1, kind: output, shape index: {}]
  %s2 = sld [smem:[#allocation0]]
  $region14: #{base_model_forward.1} parent=0
    _
  %s4 = ssub.s32 1, %s2
  %s5 = scalar_select 0, %s4, %s2
  // Predicated region
  $region2: #{base_model_forward.1} parent=0 // pred_check
    _
  $region3: #{base_model_forward.1} parent=0 // pred_check_branch
    %7 = sbr.rel (0) target = $region5
  $region4: #{base_model_forward.1} parent=0 // pred_region
    _
  $region5: #{base_model_forward.1} parent=0 // pred_fallthru
    _
  %v8 = vld [vmem:[%s0] sm:$0xff]
  %v9 = vld [vmem:[%s0 + $0x8] sm:$0xff]
  %10 = vst [vmem:[%s1] sm:$0xff] %v8
  %11 = vst [vmem:[%s1 + $0x8] sm:$0xff] %v9
  // Predicated region
  $region6: #{base_model_forward.1} parent=0 // pred_check
    _
  $region7: #{base_model_forward.1} parent=0 // pred_check_branch
    %13 = sbr.rel (0) target = $region9
  $region8: #{base_model_forward.1} parent=0 // pred_region
    _
  $region9: #{base_model_forward.1} parent=0 // pred_fallthru
    _
  // Predicated region
  $region10: #{base_model_forward.1} parent=0 // pred_check
    _
  $region11: #{base_model_forward.1} parent=0 // pred_check_branch
    %15 = sbr.rel (0) target = $region13
  $region12: #{base_model_forward.1} parent=0 // pred_region
    _
  $region13: #{base_model_forward.1} parent=0 // pred_fallthru
    _

</llo_original>
